<compile_context>
chip_gen: v5e
topology: v5e:2x2
jax: 0.10.0
libtpu: 0.0.40
codegen_flags: <defaults>
</compile_context>

<pallas_src>
import functools

import jax
import jax.numpy as jnp
from jax import lax
from jax.experimental import pallas as pl
from jax.experimental.pallas import tpu as pltpu

LANE = 128        # lanes per vreg row; batch dim maps onto lanes
IN_DIM = 1        # Linear(1, 20)
HID_DIM = 20
OUT_DIM = 1       # Linear(20, 1)
CHUNK_MAX = 64    # rows per register-resident chunk (64x128 f32 = 8 vregs)


def _round_up(a: int, b: int) -> int:
    return -(-a // b) * b


def _mlp_kernel(c_ref, d_ref, ab_ref, x_ref, o_ref, *, chunk, num_chunks):
    """out = A*x + B + sum_j c[j] * |x + d[j]|   (pure VPU, no MXU).

    x_ref / o_ref are (tile_rows, 128) f32 VMEM tiles; c/d/ab are tiny SMEM
    arrays read as broadcast scalars.  The tile is walked in `chunk`-row
    slabs so intermediates stay in vregs across all 20 hidden units.
    """
    a = ab_ref[0]
    b = ab_ref[1]

    def compute_rows(row_start):
        xv = x_ref[pl.ds(row_start, chunk), :]          # (chunk, 128) f32
        acc = xv * a + b                                 # collapsed linear + b2
        for j in range(HID_DIM):                         # static unroll
            acc = acc + jnp.abs(xv + d_ref[j]) * c_ref[j]
        o_ref[pl.ds(row_start, chunk), :] = acc

    if num_chunks == 1:
        compute_rows(0)
    else:
        def body(ci, carry):
            compute_rows(pl.multiple_of(ci * chunk, chunk))
            return carry
        lax.fori_loop(0, num_chunks, body, 0)


@functools.partial(jax.jit, static_argnames=("tile_rows",))
def net_forward(x, w1, b1, w2, b2, *, tile_rows=4096):
    """x: (N, 1) f32.  Returns (N, 1) f32 — same semantics as Net.forward."""
    n = x.shape[0]

    # ---- batch-in-lanes tiling ---------------------------------------------
    rows = -(-n // LANE)                     # number of 128-wide lane rows
    rows8 = _round_up(rows, 8)               # sublane alignment
    if rows8 >= CHUNK_MAX:
        if rows8 <= tile_rows:
            tr = _round_up(rows8, CHUNK_MAX)             # single grid step
        else:
            steps = -(-rows8 // tile_rows)               # balanced split
            tr = _round_up(-(-rows8 // steps), CHUNK_MAX)
        chunk = CHUNK_MAX
    else:
        tr = rows8                                       # tiny N: one small tile
        chunk = tr
    rows_p = _round_up(rows8, tr)
    n_pad = rows_p * LANE
    num_chunks = tr // chunk

    x_flat = x.reshape(-1).astype(jnp.float32)
    if n_pad != n:
        # only the sub-tile tail is padded; padded lanes are computed & discarded
        x_flat = jnp.pad(x_flat, (0, n_pad - n))
    x2d = x_flat.reshape(rows_p, LANE)

    # ---- fold params: relu(w1*x+b1)*w2 = 0.5*w2*(w1*x+b1) + c*|x+d| ---------
    w1f = w1.reshape(HID_DIM).astype(jnp.float32)
    b1f = b1.reshape(HID_DIM).astype(jnp.float32)
    w2f = w2.reshape(HID_DIM).astype(jnp.float32)
    b2f = b2.reshape(()).astype(jnp.float32)

    nz = w1f != 0.0
    safe_w1 = jnp.where(nz, w1f, 1.0)
    d = jnp.where(nz, b1f / safe_w1, 0.0)                # per-unit shift
    c = jnp.where(nz, 0.5 * w2f * jnp.abs(w1f), 0.0)     # per-unit |.| weight
    a_lin = 0.5 * jnp.sum(w2f * w1f)                     # collapsed linear slope
    b_lin = b2f + jnp.sum(                               # collapsed offset (+ b2)
        jnp.where(nz, 0.5 * w2f * b1f, w2f * jnp.maximum(b1f, 0.0)))
    ab = jnp.stack([a_lin, b_lin])                       # (2,)

    smem_spec = pl.BlockSpec(memory_space=pltpu.MemorySpace.SMEM)
    kernel = functools.partial(_mlp_kernel, chunk=chunk, num_chunks=num_chunks)

    out2d = pl.pallas_call(
        kernel,
        out_shape=jax.ShapeDtypeStruct((rows_p, LANE), jnp.float32),
        grid_spec=pltpu.PrefetchScalarGridSpec(
            num_scalar_prefetch=0,
            grid=(rows_p // tr,),
            in_specs=[
                smem_spec,                                   # c  (20,)
                smem_spec,                                   # d  (20,)
                smem_spec,                                   # ab (2,)
                pl.BlockSpec((tr, LANE), lambda i: (i, 0)),  # x tile
            ],
            out_specs=pl.BlockSpec((tr, LANE), lambda i: (i, 0)),
        ),
        compiler_params=pltpu.CompilerParams(
            dimension_semantics=("parallel",)),
    )(c, d, ab, x2d)

    out_flat = out2d.reshape(-1)
    if n_pad != n:
        out_flat = out_flat[:n]
    return out_flat.reshape(n, OUT_DIM)


def init_params(key):
    # PyTorch Linear default init: U(-1/sqrt(fan_in), 1/sqrt(fan_in)).
    k1, k2, k3, k4 = jax.random.split(key, 4)
    bound1 = 1.0 / jnp.sqrt(jnp.float32(IN_DIM))
    bound2 = 1.0 / jnp.sqrt(jnp.float32(HID_DIM))
    w1 = jax.random.uniform(k1, (IN_DIM, HID_DIM), jnp.float32, -bound1, bound1)
    b1 = jax.random.uniform(k2, (HID_DIM,), jnp.float32, -bound1, bound1)
    w2 = jax.random.uniform(k3, (HID_DIM, OUT_DIM), jnp.float32, -bound2, bound2)
    b2 = jax.random.uniform(k4, (OUT_DIM,), jnp.float32, -bound2, bound2)
    return w1, b1, w2, b2


if __name__ == "__main__":
    key = jax.random.PRNGKey(0)
    w1, b1, w2, b2 = init_params(key)

    # same input as the PyTorch reference: torch.linspace(-1, 1, 1000).unsqueeze(1)
    n = 1000                      # deliberately NOT a multiple of 128
    x = jnp.linspace(-1.0, 1.0, n, dtype=jnp.float32).reshape(n, 1)

    out = net_forward(x, w1, b1, w2, b2)
    jax.block_until_ready(out)

    # pure-JAX reference check
    ref = jnp.maximum(x @ w1 + b1, 0.0) @ w2 + b2
    assert out.shape == (n, OUT_DIM)
    assert jnp.allclose(out, ref, atol=1e-5, rtol=1e-5)

    print("KERNEL_OK")
</pallas_src>

<mosaic_0001>
module attributes {stable_mosaic.version = 11 : i64} {
  func.func @_mlp_kernel(%arg0: i32, %arg1: memref<20xf32, #tpu.memory_space<smem>>, %arg2: memref<20xf32, #tpu.memory_space<smem>>, %arg3: memref<2xf32, #tpu.memory_space<smem>>, %arg4: memref<8x128xf32, #tpu.memory_space<vmem>>, %arg5: memref<8x128xf32, #tpu.memory_space<vmem>>) attributes {dimension_semantics = [#tpu.dimension_semantics<parallel>], iteration_bounds = array<i64: 1>, scalar_prefetch = 0 : i64, scratch_operands = 0 : i64, tpu.core_type = #tpu.core_type<tc>, window_params = [{transform_indices = @transform_0, window_bounds = array<i64: 20>}, {transform_indices = @transform_1, window_bounds = array<i64: 20>}, {transform_indices = @transform_2, window_bounds = array<i64: 2>}, {transform_indices = @transform_3, window_bounds = array<i64: 8, 128>}, {transform_indices = @transform_4, window_bounds = array<i64: 8, 128>}]} {
    %c0 = arith.constant 0 : index
    %0 = memref.load %arg3[%c0] : memref<2xf32, #tpu.memory_space<smem>>
    %c1 = arith.constant 1 : index
    %1 = memref.load %arg3[%c1] : memref<2xf32, #tpu.memory_space<smem>>
    %c0_0 = arith.constant 0 : index
    %c0_1 = arith.constant 0 : index
    %2 = vector.load %arg4[%c0_0, %c0_1] : memref<8x128xf32, #tpu.memory_space<vmem>>, vector<8x128xf32>
    %3 = vector.broadcast %0 : f32 to vector<8x128xf32>
    %4 = arith.mulf %2, %3 : vector<8x128xf32>
    %5 = vector.broadcast %1 : f32 to vector<8x128xf32>
    %6 = arith.addf %4, %5 : vector<8x128xf32>
    %c0_2 = arith.constant 0 : index
    %7 = memref.load %arg2[%c0_2] : memref<20xf32, #tpu.memory_space<smem>>
    %8 = vector.broadcast %7 : f32 to vector<8x128xf32>
    %9 = arith.addf %2, %8 : vector<8x128xf32>
    %10 = math.absf %9 : vector<8x128xf32>
    %c0_3 = arith.constant 0 : index
    %11 = memref.load %arg1[%c0_3] : memref<20xf32, #tpu.memory_space<smem>>
    %12 = vector.broadcast %11 : f32 to vector<8x128xf32>
    %13 = arith.mulf %10, %12 : vector<8x128xf32>
    %14 = arith.addf %6, %13 : vector<8x128xf32>
    %c1_4 = arith.constant 1 : index
    %15 = memref.load %arg2[%c1_4] : memref<20xf32, #tpu.memory_space<smem>>
    %16 = vector.broadcast %15 : f32 to vector<8x128xf32>
    %17 = arith.addf %2, %16 : vector<8x128xf32>
    %18 = math.absf %17 : vector<8x128xf32>
    %c1_5 = arith.constant 1 : index
    %19 = memref.load %arg1[%c1_5] : memref<20xf32, #tpu.memory_space<smem>>
    %20 = vector.broadcast %19 : f32 to vector<8x128xf32>
    %21 = arith.mulf %18, %20 : vector<8x128xf32>
    %22 = arith.addf %14, %21 : vector<8x128xf32>
    %c2 = arith.constant 2 : index
    %23 = memref.load %arg2[%c2] : memref<20xf32, #tpu.memory_space<smem>>
    %24 = vector.broadcast %23 : f32 to vector<8x128xf32>
    %25 = arith.addf %2, %24 : vector<8x128xf32>
    %26 = math.absf %25 : vector<8x128xf32>
    %c2_6 = arith.constant 2 : index
    %27 = memref.load %arg1[%c2_6] : memref<20xf32, #tpu.memory_space<smem>>
    %28 = vector.broadcast %27 : f32 to vector<8x128xf32>
    %29 = arith.mulf %26, %28 : vector<8x128xf32>
    %30 = arith.addf %22, %29 : vector<8x128xf32>
    %c3 = arith.constant 3 : index
    %31 = memref.load %arg2[%c3] : memref<20xf32, #tpu.memory_space<smem>>
    %32 = vector.broadcast %31 : f32 to vector<8x128xf32>
    %33 = arith.addf %2, %32 : vector<8x128xf32>
    %34 = math.absf %33 : vector<8x128xf32>
    %c3_7 = arith.constant 3 : index
    %35 = memref.load %arg1[%c3_7] : memref<20xf32, #tpu.memory_space<smem>>
    %36 = vector.broadcast %35 : f32 to vector<8x128xf32>
    %37 = arith.mulf %34, %36 : vector<8x128xf32>
    %38 = arith.addf %30, %37 : vector<8x128xf32>
    %c4 = arith.constant 4 : index
    %39 = memref.load %arg2[%c4] : memref<20xf32, #tpu.memory_space<smem>>
    %40 = vector.broadcast %39 : f32 to vector<8x128xf32>
    %41 = arith.addf %2, %40 : vector<8x128xf32>
    %42 = math.absf %41 : vector<8x128xf32>
    %c4_8 = arith.constant 4 : index
    %43 = memref.load %arg1[%c4_8] : memref<20xf32, #tpu.memory_space<smem>>
    %44 = vector.broadcast %43 : f32 to vector<8x128xf32>
    %45 = arith.mulf %42, %44 : vector<8x128xf32>
    %46 = arith.addf %38, %45 : vector<8x128xf32>
    %c5 = arith.constant 5 : index
    %47 = memref.load %arg2[%c5] : memref<20xf32, #tpu.memory_space<smem>>
    %48 = vector.broadcast %47 : f32 to vector<8x128xf32>
    %49 = arith.addf %2, %48 : vector<8x128xf32>
    %50 = math.absf %49 : vector<8x128xf32>
    %c5_9 = arith.constant 5 : index
    %51 = memref.load %arg1[%c5_9] : memref<20xf32, #tpu.memory_space<smem>>
    %52 = vector.broadcast %51 : f32 to vector<8x128xf32>
    %53 = arith.mulf %50, %52 : vector<8x128xf32>
    %54 = arith.addf %46, %53 : vector<8x128xf32>
    %c6 = arith.constant 6 : index
    %55 = memref.load %arg2[%c6] : memref<20xf32, #tpu.memory_space<smem>>
    %56 = vector.broadcast %55 : f32 to vector<8x128xf32>
    %57 = arith.addf %2, %56 : vector<8x128xf32>
    %58 = math.absf %57 : vector<8x128xf32>
    %c6_10 = arith.constant 6 : index
    %59 = memref.load %arg1[%c6_10] : memref<20xf32, #tpu.memory_space<smem>>
    %60 = vector.broadcast %59 : f32 to vector<8x128xf32>
    %61 = arith.mulf %58, %60 : vector<8x128xf32>
    %62 = arith.addf %54, %61 : vector<8x128xf32>
    %c7 = arith.constant 7 : index
    %63 = memref.load %arg2[%c7] : memref<20xf32, #tpu.memory_space<smem>>
    %64 = vector.broadcast %63 : f32 to vector<8x128xf32>
    %65 = arith.addf %2, %64 : vector<8x128xf32>
    %66 = math.absf %65 : vector<8x128xf32>
    %c7_11 = arith.constant 7 : index
    %67 = memref.load %arg1[%c7_11] : memref<20xf32, #tpu.memory_space<smem>>
    %68 = vector.broadcast %67 : f32 to vector<8x128xf32>
    %69 = arith.mulf %66, %68 : vector<8x128xf32>
    %70 = arith.addf %62, %69 : vector<8x128xf32>
    %c8 = arith.constant 8 : index
    %71 = memref.load %arg2[%c8] : memref<20xf32, #tpu.memory_space<smem>>
    %72 = vector.broadcast %71 : f32 to vector<8x128xf32>
    %73 = arith.addf %2, %72 : vector<8x128xf32>
    %74 = math.absf %73 : vector<8x128xf32>
    %c8_12 = arith.constant 8 : index
    %75 = memref.load %arg1[%c8_12] : memref<20xf32, #tpu.memory_space<smem>>
    %76 = vector.broadcast %75 : f32 to vector<8x128xf32>
    %77 = arith.mulf %74, %76 : vector<8x128xf32>
    %78 = arith.addf %70, %77 : vector<8x128xf32>
    %c9 = arith.constant 9 : index
    %79 = memref.load %arg2[%c9] : memref<20xf32, #tpu.memory_space<smem>>
    %80 = vector.broadcast %79 : f32 to vector<8x128xf32>
    %81 = arith.addf %2, %80 : vector<8x128xf32>
    %82 = math.absf %81 : vector<8x128xf32>
    %c9_13 = arith.constant 9 : index
    %83 = memref.load %arg1[%c9_13] : memref<20xf32, #tpu.memory_space<smem>>
    %84 = vector.broadcast %83 : f32 to vector<8x128xf32>
    %85 = arith.mulf %82, %84 : vector<8x128xf32>
    %86 = arith.addf %78, %85 : vector<8x128xf32>
    %c10 = arith.constant 10 : index
    %87 = memref.load %arg2[%c10] : memref<20xf32, #tpu.memory_space<smem>>
    %88 = vector.broadcast %87 : f32 to vector<8x128xf32>
    %89 = arith.addf %2, %88 : vector<8x128xf32>
    %90 = math.absf %89 : vector<8x128xf32>
    %c10_14 = arith.constant 10 : index
    %91 = memref.load %arg1[%c10_14] : memref<20xf32, #tpu.memory_space<smem>>
    %92 = vector.broadcast %91 : f32 to vector<8x128xf32>
    %93 = arith.mulf %90, %92 : vector<8x128xf32>
    %94 = arith.addf %86, %93 : vector<8x128xf32>
    %c11 = arith.constant 11 : index
    %95 = memref.load %arg2[%c11] : memref<20xf32, #tpu.memory_space<smem>>
    %96 = vector.broadcast %95 : f32 to vector<8x128xf32>
    %97 = arith.addf %2, %96 : vector<8x128xf32>
    %98 = math.absf %97 : vector<8x128xf32>
    %c11_15 = arith.constant 11 : index
    %99 = memref.load %arg1[%c11_15] : memref<20xf32, #tpu.memory_space<smem>>
    %100 = vector.broadcast %99 : f32 to vector<8x128xf32>
    %101 = arith.mulf %98, %100 : vector<8x128xf32>
    %102 = arith.addf %94, %101 : vector<8x128xf32>
    %c12 = arith.constant 12 : index
    %103 = memref.load %arg2[%c12] : memref<20xf32, #tpu.memory_space<smem>>
    %104 = vector.broadcast %103 : f32 to vector<8x128xf32>
    %105 = arith.addf %2, %104 : vector<8x128xf32>
    %106 = math.absf %105 : vector<8x128xf32>
    %c12_16 = arith.constant 12 : index
    %107 = memref.load %arg1[%c12_16] : memref<20xf32, #tpu.memory_space<smem>>
    %108 = vector.broadcast %107 : f32 to vector<8x128xf32>
    %109 = arith.mulf %106, %108 : vector<8x128xf32>
    %110 = arith.addf %102, %109 : vector<8x128xf32>
    %c13 = arith.constant 13 : index
    %111 = memref.load %arg2[%c13] : memref<20xf32, #tpu.memory_space<smem>>
    %112 = vector.broadcast %111 : f32 to vector<8x128xf32>
    %113 = arith.addf %2, %112 : vector<8x128xf32>
    %114 = math.absf %113 : vector<8x128xf32>
    %c13_17 = arith.constant 13 : index
    %115 = memref.load %arg1[%c13_17] : memref<20xf32, #tpu.memory_space<smem>>
    %116 = vector.broadcast %115 : f32 to vector<8x128xf32>
    %117 = arith.mulf %114, %116 : vector<8x128xf32>
    %118 = arith.addf %110, %117 : vector<8x128xf32>
    %c14 = arith.constant 14 : index
    %119 = memref.load %arg2[%c14] : memref<20xf32, #tpu.memory_space<smem>>
    %120 = vector.broadcast %119 : f32 to vector<8x128xf32>
    %121 = arith.addf %2, %120 : vector<8x128xf32>
    %122 = math.absf %121 : vector<8x128xf32>
    %c14_18 = arith.constant 14 : index
    %123 = memref.load %arg1[%c14_18] : memref<20xf32, #tpu.memory_space<smem>>
    %124 = vector.broadcast %123 : f32 to vector<8x128xf32>
    %125 = arith.mulf %122, %124 : vector<8x128xf32>
    %126 = arith.addf %118, %125 : vector<8x128xf32>
    %c15 = arith.constant 15 : index
    %127 = memref.load %arg2[%c15] : memref<20xf32, #tpu.memory_space<smem>>
    %128 = vector.broadcast %127 : f32 to vector<8x128xf32>
    %129 = arith.addf %2, %128 : vector<8x128xf32>
    %130 = math.absf %129 : vector<8x128xf32>
    %c15_19 = arith.constant 15 : index
    %131 = memref.load %arg1[%c15_19] : memref<20xf32, #tpu.memory_space<smem>>
    %132 = vector.broadcast %131 : f32 to vector<8x128xf32>
    %133 = arith.mulf %130, %132 : vector<8x128xf32>
    %134 = arith.addf %126, %133 : vector<8x128xf32>
    %c16 = arith.constant 16 : index
    %135 = memref.load %arg2[%c16] : memref<20xf32, #tpu.memory_space<smem>>
    %136 = vector.broadcast %135 : f32 to vector<8x128xf32>
    %137 = arith.addf %2, %136 : vector<8x128xf32>
    %138 = math.absf %137 : vector<8x128xf32>
    %c16_20 = arith.constant 16 : index
    %139 = memref.load %arg1[%c16_20] : memref<20xf32, #tpu.memory_space<smem>>
    %140 = vector.broadcast %139 : f32 to vector<8x128xf32>
    %141 = arith.mulf %138, %140 : vector<8x128xf32>
    %142 = arith.addf %134, %141 : vector<8x128xf32>
    %c17 = arith.constant 17 : index
    %143 = memref.load %arg2[%c17] : memref<20xf32, #tpu.memory_space<smem>>
    %144 = vector.broadcast %143 : f32 to vector<8x128xf32>
    %145 = arith.addf %2, %144 : vector<8x128xf32>
    %146 = math.absf %145 : vector<8x128xf32>
    %c17_21 = arith.constant 17 : index
    %147 = memref.load %arg1[%c17_21] : memref<20xf32, #tpu.memory_space<smem>>
    %148 = vector.broadcast %147 : f32 to vector<8x128xf32>
    %149 = arith.mulf %146, %148 : vector<8x128xf32>
    %150 = arith.addf %142, %149 : vector<8x128xf32>
    %c18 = arith.constant 18 : index
    %151 = memref.load %arg2[%c18] : memref<20xf32, #tpu.memory_space<smem>>
    %152 = vector.broadcast %151 : f32 to vector<8x128xf32>
    %153 = arith.addf %2, %152 : vector<8x128xf32>
    %154 = math.absf %153 : vector<8x128xf32>
    %c18_22 = arith.constant 18 : index
    %155 = memref.load %arg1[%c18_22] : memref<20xf32, #tpu.memory_space<smem>>
    %156 = vector.broadcast %155 : f32 to vector<8x128xf32>
    %157 = arith.mulf %154, %156 : vector<8x128xf32>
    %158 = arith.addf %150, %157 : vector<8x128xf32>
    %c19 = arith.constant 19 : index
    %159 = memref.load %arg2[%c19] : memref<20xf32, #tpu.memory_space<smem>>
    %160 = vector.broadcast %159 : f32 to vector<8x128xf32>
    %161 = arith.addf %2, %160 : vector<8x128xf32>
    %162 = math.absf %161 : vector<8x128xf32>
    %c19_23 = arith.constant 19 : index
    %163 = memref.load %arg1[%c19_23] : memref<20xf32, #tpu.memory_space<smem>>
    %164 = vector.broadcast %163 : f32 to vector<8x128xf32>
    %165 = arith.mulf %162, %164 : vector<8x128xf32>
    %166 = arith.addf %158, %165 : vector<8x128xf32>
    %c0_24 = arith.constant 0 : index
    %c0_25 = arith.constant 0 : index
    %167 = vector.load %arg5[%c0_24, %c0_25] : memref<8x128xf32, #tpu.memory_space<vmem>>, vector<8x128xf32>
    tpu.vector_store %arg5[%c0_24, %c0_25], %166 {strides = array<i32>} : memref<8x128xf32, #tpu.memory_space<vmem>>, vector<8x128xf32>,
    return
  }
  func.func @transform_0(%arg0: i32) -> i32 {
    %c0_i32 = arith.constant 0 : i32
    %c0_i32_0 = arith.constant 0 : i32
    return %c0_i32 : i32
  }
  func.func @transform_1(%arg0: i32) -> i32 {
    %c0_i32 = arith.constant 0 : i32
    %c0_i32_0 = arith.constant 0 : i32
    return %c0_i32 : i32
  }
  func.func @transform_2(%arg0: i32) -> i32 {
    %c0_i32 = arith.constant 0 : i32
    %c0_i32_0 = arith.constant 0 : i32
    return %c0_i32 : i32
  }
  func.func @transform_3(%arg0: i32) -> (i32, i32) {
    %c0_i32 = arith.constant 0 : i32
    %c0_i32_0 = arith.constant 0 : i32
    return %arg0, %c0_i32 : i32, i32
  }
  func.func @transform_4(%arg0: i32) -> (i32, i32) {
    %c0_i32 = arith.constant 0 : i32
    %c0_i32_0 = arith.constant 0 : i32
    return %arg0, %c0_i32 : i32, i32
  }
}

</mosaic_0001>

<llo_original>
// kernel: net_forward.1
$region0: #{net_forward.1}
  #allocation0 [shape = 'u32[]', space=smem, size = 0x4, offset = 0x4, fixed_abs, tag = 'smem constant byte address 0x4 - core index']
  #allocation1 [shape = 'u32[72,128]{1,0:T(1,128)}', space=vmem, size = 0x9000, scoped, tag = 'internal scratch']
  %s0 = inlined_call_operand.vmem [shape: f32[20], index: 0, kind: input, shape index: {}]
  %s1 = inlined_call_operand.vmem [shape: f32[20], index: 1, kind: input, shape index: {}]
  %s2 = inlined_call_operand.vmem [shape: f32[2], index: 2, kind: input, shape index: {}]
  %s3 = inlined_call_operand.vmem [shape: f32[8,128], index: 3, kind: input, shape index: {}]
  %s4 = inlined_call_operand.hbm [shape: f32[8,128], index: 4, kind: output, shape index: {}]
  %s5 = sld [smem:[#allocation0]]
  $region38: #{net_forward.1} parent=0
    _
  %s7 = ssub.s32 1, %s5
  %s8 = scalar_select 0, %s7, %s5
  $region1: #{net_forward.1} parent=0
    #allocation2 [shape = 'u8[512]{0}', space=smem, size = 0x200, scoped, tag = 'input window, operand 0, single buffered']
    #allocation3 [shape = 's32[1]{0}', space=sflag, size = 0x4, scoped, tag = 'scoped memory for net_forward.1']
    #allocation4 [shape = 's32[1]{0}', space=sflag, size = 0x4, scoped, tag = 'scoped memory for net_forward.1']
    #allocation5 [shape = 'u8[512]{0}', space=smem, size = 0x200, scoped, tag = 'input window, operand 1, single buffered']
    #allocation6 [shape = 's32[1]{0}', space=sflag, size = 0x4, scoped, tag = 'scoped memory for net_forward.1']
    #allocation7 [shape = 'u8[512]{0}', space=smem, size = 0x200, scoped, tag = 'input window, operand 2, single buffered']
    #allocation8 [shape = 'u8[4096]{0}', space=vmem, size = 0x1000, scoped, tag = 'output window, operand 0, single buffered']
    %9 = vsyncpa [#allocation4], 0
    %10 = vsyncpa [#allocation6], 0
    %11 = vsyncpa [#allocation3], 0
    // Predicated region
    $region2: #{net_forward.1} parent=1 // pred_check
      _
    $region3: #{net_forward.1} parent=1 // pred_check_branch
      %13 = sbr.rel (0) target = $region5
    $region4: #{net_forward.1} parent=1 // pred_region
      %15 = vsyncadd [#allocation4], 0
      %s17 = sshll.u32 %s0, 4
      %s18 = int_to_ptr.vmem [resolvable:$true] %s17
      %20 = dma.vmem_to_smem %s18, 16, [#allocation2], [#allocation4]
    $region5: #{net_forward.1} parent=1 // pred_fallthru
      _
    // Predicated region
    $region6: #{net_forward.1} parent=1 // pred_check
      _
    $region7: #{net_forward.1} parent=1 // pred_check_branch
      %22 = sbr.rel (0) target = $region9
    $region8: #{net_forward.1} parent=1 // pred_region
      %24 = vsyncadd [#allocation6], 0
      %s26 = sshll.u32 %s1, 4
      %s27 = int_to_ptr.vmem [resolvable:$true] %s26
      %29 = dma.vmem_to_smem %s27, 16, [#allocation5], [#allocation6]
    $region9: #{net_forward.1} parent=1 // pred_fallthru
      _
    // Predicated region
    $region10: #{net_forward.1} parent=1 // pred_check
      _
    $region11: #{net_forward.1} parent=1 // pred_check_branch
      %31 = sbr.rel (0) target = $region13
    $region12: #{net_forward.1} parent=1 // pred_region
      %33 = vsyncadd [#allocation6], 0
      %s35 = sshll.u32 %s2, 4
      %s36 = int_to_ptr.vmem [resolvable:$true] %s35
      %38 = dma.vmem_to_smem %s36, 16, [#allocation7], [#allocation6]
    $region13: #{net_forward.1} parent=1 // pred_fallthru
      _
    // Predicated region
    $region14: #{net_forward.1} parent=1 // pred_check
      _
    $region15: #{net_forward.1} parent=1 // pred_check_branch
      %40 = sbr.rel (0) target = $region17
    $region16: #{net_forward.1} parent=1 // pred_region
      _
    $region17: #{net_forward.1} parent=1 // pred_fallthru
      _
    // Predicated region
    $region18: #{net_forward.1} parent=1 // pred_check
      _
    $region19: #{net_forward.1} parent=1 // pred_check_branch
      %42 = sbr.rel (0) target = $region21
    $region20: #{net_forward.1} parent=1 // pred_region
      %44 = dma.done [#allocation4], 16
    $region21: #{net_forward.1} parent=1 // pred_fallthru
      _
    // Predicated region
    $region22: #{net_forward.1} parent=1 // pred_check
      _
    $region23: #{net_forward.1} parent=1 // pred_check_branch
      %46 = sbr.rel (0) target = $region25
    $region24: #{net_forward.1} parent=1 // pred_region
      %48 = dma.done [#allocation6], 16
    $region25: #{net_forward.1} parent=1 // pred_fallthru
      _
    // Predicated region
    $region26: #{net_forward.1} parent=1 // pred_check
      _
    $region27: #{net_forward.1} parent=1 // pred_check_branch
      %50 = sbr.rel (0) target = $region29
    $region28: #{net_forward.1} parent=1 // pred_region
      %52 = dma.done [#allocation6], 16
    $region29: #{net_forward.1} parent=1 // pred_fallthru
      _
    %53 = sfence
    %s54 = sld [smem:[#allocation7]]
    %s55 = sld [smem:[#allocation7 + $0x1]]
    %v56 = vld [vmem:[%s3] sm:$0xff]
    %v57 = vstv %s54
    %v58 = vmul.f32 %v56, %v57
    %v59 = vstv %s55
    %v60 = vadd.f32 %v58, %v59
    %s61 = sld [smem:[#allocation5]]
    %v62 = vstv %s61
    %v63 = vadd.f32 %v56, %v62
    %v64 = vand.u32 2147483647, %v63
    %s65 = sld [smem:[#allocation2]]
    %v66 = vstv %s65
    %v67 = vmul.f32 %v64, %v66
    %v68 = vadd.f32 %v60, %v67
    %s69 = sld [smem:[#allocation5 + $0x1]]
    %v70 = vstv %s69
    %v71 = vadd.f32 %v56, %v70
    %v72 = vand.u32 2147483647, %v71
    %s73 = sld [smem:[#allocation2 + $0x1]]
    %v74 = vstv %s73
    %v75 = vmul.f32 %v72, %v74
    %v76 = vadd.f32 %v68, %v75
    %s77 = sld [smem:[#allocation5 + $0x2]]
    %v78 = vstv %s77
    %v79 = vadd.f32 %v56, %v78
    %v80 = vand.u32 2147483647, %v79
    %s81 = sld [smem:[#allocation2 + $0x2]]
    %v82 = vstv %s81
    %v83 = vmul.f32 %v80, %v82
    %v84 = vadd.f32 %v76, %v83
    %s85 = sld [smem:[#allocation5 + $0x3]]
    %v86 = vstv %s85
    %v87 = vadd.f32 %v56, %v86
    %v88 = vand.u32 2147483647, %v87
    %s89 = sld [smem:[#allocation2 + $0x3]]
    %v90 = vstv %s89
    %v91 = vmul.f32 %v88, %v90
    %v92 = vadd.f32 %v84, %v91
    %s93 = sld [smem:[#allocation5 + $0x4]]
    %v94 = vstv %s93
    %v95 = vadd.f32 %v56, %v94
    %v96 = vand.u32 2147483647, %v95
    %s97 = sld [smem:[#allocation2 + $0x4]]
    %v98 = vstv %s97
    %v99 = vmul.f32 %v96, %v98
    %v100 = vadd.f32 %v92, %v99
    %s101 = sld [smem:[#allocation5 + $0x5]]
    %v102 = vstv %s101
    %v103 = vadd.f32 %v56, %v102
    %v104 = vand.u32 2147483647, %v103
    %s105 = sld [smem:[#allocation2 + $0x5]]
    %v106 = vstv %s105
    %v107 = vmul.f32 %v104, %v106
    %v108 = vadd.f32 %v100, %v107
    %s109 = sld [smem:[#allocation5 + $0x6]]
    %v110 = vstv %s109
    %v111 = vadd.f32 %v56, %v110
    %v112 = vand.u32 2147483647, %v111
    %s113 = sld [smem:[#allocation2 + $0x6]]
    %v114 = vstv %s113
    %v115 = vmul.f32 %v112, %v114
    %v116 = vadd.f32 %v108, %v115
    %s117 = sld [smem:[#allocation5 + $0x7]]
    %v118 = vstv %s117
    %v119 = vadd.f32 %v56, %v118
    %v120 = vand.u32 2147483647, %v119
    %s121 = sld [smem:[#allocation2 + $0x7]]
    %v122 = vstv %s121
    %v123 = vmul.f32 %v120, %v122
    %v124 = vadd.f32 %v116, %v123
    %s125 = sld [smem:[#allocation5 + $0x8]]
    %v126 = vstv %s125
    %v127 = vadd.f32 %v56, %v126
    %v128 = vand.u32 2147483647, %v127
    %s129 = sld [smem:[#allocation2 + $0x8]]
    %v130 = vstv %s129
    %v131 = vmul.f32 %v128, %v130
    %v132 = vadd.f32 %v124, %v131
    %s133 = sld [smem:[#allocation5 + $0x9]]
    %v134 = vstv %s133
    %v135 = vadd.f32 %v56, %v134
    %v136 = vand.u32 2147483647, %v135
    %s137 = sld [smem:[#allocation2 + $0x9]]
    %v138 = vstv %s137
    %v139 = vmul.f32 %v136, %v138
    %v140 = vadd.f32 %v132, %v139
    %s141 = sld [smem:[#allocation5 + $0xa]]
    %v142 = vstv %s141
    %v143 = vadd.f32 %v56, %v142
    %v144 = vand.u32 2147483647, %v143
    %s145 = sld [smem:[#allocation2 + $0xa]]
    %v146 = vstv %s145
    %v147 = vmul.f32 %v144, %v146
    %v148 = vadd.f32 %v140, %v147
    %s149 = sld [smem:[#allocation5 + $0xb]]
    %v150 = vstv %s149
    %v151 = vadd.f32 %v56, %v150
    %v152 = vand.u32 2147483647, %v151
    %s153 = sld [smem:[#allocation2 + $0xb]]
    %v154 = vstv %s153
    %v155 = vmul.f32 %v152, %v154
    %v156 = vadd.f32 %v148, %v155
    %s157 = sld [smem:[#allocation5 + $0xc]]
    %v158 = vstv %s157
    %v159 = vadd.f32 %v56, %v158
    %v160 = vand.u32 2147483647, %v159
    %s161 = sld [smem:[#allocation2 + $0xc]]
    %v162 = vstv %s161
    %v163 = vmul.f32 %v160, %v162
    %v164 = vadd.f32 %v156, %v163
    %s165 = sld [smem:[#allocation5 + $0xd]]
    %v166 = vstv %s165
    %v167 = vadd.f32 %v56, %v166
    %v168 = vand.u32 2147483647, %v167
    %s169 = sld [smem:[#allocation2 + $0xd]]
    %v170 = vstv %s169
    %v171 = vmul.f32 %v168, %v170
    %v172 = vadd.f32 %v164, %v171
    %s173 = sld [smem:[#allocation5 + $0xe]]
    %v174 = vstv %s173
    %v175 = vadd.f32 %v56, %v174
    %v176 = vand.u32 2147483647, %v175
    %s177 = sld [smem:[#allocation2 + $0xe]]
    %v178 = vstv %s177
    %v179 = vmul.f32 %v176, %v178
    %v180 = vadd.f32 %v172, %v179
    %s181 = sld [smem:[#allocation5 + $0xf]]
    %v182 = vstv %s181
    %v183 = vadd.f32 %v56, %v182
    %v184 = vand.u32 2147483647, %v183
    %s185 = sld [smem:[#allocation2 + $0xf]]
    %v186 = vstv %s185
    %v187 = vmul.f32 %v184, %v186
    %v188 = vadd.f32 %v180, %v187
    %s189 = sld [smem:[#allocation5 + $0x10]]
    %v190 = vstv %s189
    %v191 = vadd.f32 %v56, %v190
    %v192 = vand.u32 2147483647, %v191
    %s193 = sld [smem:[#allocation2 + $0x10]]
    %v194 = vstv %s193
    %v195 = vmul.f32 %v192, %v194
    %v196 = vadd.f32 %v188, %v195
    %s197 = sld [smem:[#allocation5 + $0x11]]
    %v198 = vstv %s197
    %v199 = vadd.f32 %v56, %v198
    %v200 = vand.u32 2147483647, %v199
    %s201 = sld [smem:[#allocation2 + $0x11]]
    %v202 = vstv %s201
    %v203 = vmul.f32 %v200, %v202
    %v204 = vadd.f32 %v196, %v203
    %s205 = sld [smem:[#allocation5 + $0x12]]
    %v206 = vstv %s205
    %v207 = vadd.f32 %v56, %v206
    %v208 = vand.u32 2147483647, %v207
    %s209 = sld [smem:[#allocation2 + $0x12]]
    %v210 = vstv %s209
    %v211 = vmul.f32 %v208, %v210
    %v212 = vadd.f32 %v204, %v211
    %s213 = sld [smem:[#allocation5 + $0x13]]
    %v214 = vstv %s213
    %v215 = vadd.f32 %v56, %v214
    %v216 = vand.u32 2147483647, %v215
    %s217 = sld [smem:[#allocation2 + $0x13]]
    %v218 = vstv %s217
    %v219 = vmul.f32 %v216, %v218
    %v220 = vadd.f32 %v212, %v219
    %221 = vst [vmem:[#allocation8] sm:$0xff] %v220
    // Predicated region
    $region30: #{net_forward.1} parent=1 // pred_check
      _
    $region31: #{net_forward.1} parent=1 // pred_check_branch
      %223 = sbr.rel (0) target = $region33
    $region32: #{net_forward.1} parent=1 // pred_region
      %225 = vsyncadd [#allocation3], 0
      %s227 = sshll.u32 [#allocation8], 4
      %s228 = int_to_ptr.vmem [resolvable:$true] %s227
      %s229 = sshll.u32 %s4, 4
      %s230 = int_to_ptr.hbm [resolvable:$true] %s229
      %232 = dma.vmem_to_hbm [thread:$0]  %s228, 128, %s230, [#allocation3]
    $region33: #{net_forward.1} parent=1 // pred_fallthru
      _
    // Predicated region
    $region34: #{net_forward.1} parent=1 // pred_check
      _
    $region35: #{net_forward.1} parent=1 // pred_check_branch
      %234 = sbr.rel (0) target = $region37
    $region36: #{net_forward.1} parent=1 // pred_region
      %236 = dma.done [#allocation3], 128
    $region37: #{net_forward.1} parent=1 // pred_fallthru
      _
    %237 = vsyncpa [#allocation3], 1
    %238 = vsyncpa [#allocation4], 1
    %239 = vsyncpa [#allocation6], 1

</llo_original>
